<compile_context>
chip_gen: v7x
topology: tpu7x:2x2x1
jax: 0.10.0
libtpu: 0.0.40
codegen_flags: <defaults>
</compile_context>

<pallas_src>
import functools

import jax
import jax.numpy as jnp
from jax.experimental import pallas as pl
from jax.experimental.pallas import tpu as pltpu

ALPHA = 0.25
GAMMA = 2.0   # gamma == 2 -> explicit square inside the kernel

LANE = 128
SUBLANE = 8


def _focal_loss_kernel(x_ref, t_ref, o_ref, acc_ref, *,
                       valid_rows, tile_rows, strip_rows,
                       blocks_total, blocks_per_core, has_overhang,
                       hard_targets):
    c = pl.program_id(0)                 # core-split axis ("parallel")
    i = pl.program_id(1)                 # sequential reduction axis ("arbitrary")
    blk = c * blocks_per_core + i        # global block index (may overhang)
    n_strips = tile_rows // strip_rows
    needs_mask = (valid_rows % tile_rows) != 0   # static Python bool

    @pl.when(i == 0)
    def _():
        acc_ref[...] = jnp.zeros_like(acc_ref)

    def accumulate(masked):
        # Strip-mined (statically unrolled) elementwise body: keeps each
        # intermediate at (strip_rows, 128) and ends every strip with an
        # update of the single-vreg accumulator, bounding live ranges.
        for s in range(n_strips):
            r0 = s * strip_rows
            x = x_ref[pl.ds(r0, strip_rows), :].astype(jnp.float32)
            t = t_ref[pl.ds(r0, strip_rows), :].astype(jnp.float32)
            ax = jnp.abs(x)
            e = jnp.exp(-ax)              # e in (0, 1]
            d = 1.0 + e                   # in (1, 2] -> plain log is safe here
            log1pe = jnp.log(d)
            if hard_targets:
                # Assumes t in {0, 1}:  pt = sigmoid(x) if t==1 else 1-sigmoid(x).
                # match <=> sign(x) agrees with t  =>  pt = 1/(1+e), else e/(1+e).
                match = (x >= 0.0) == (t > 0.5)
                bce = log1pe + jnp.where(match, 0.0, ax)
                r = pl.reciprocal(d, approx=True)     # EUP slot, off the VALU
                r = r * (2.0 - d * r)                 # one Newton step (~f32 exact)
                one_m_pt = jnp.where(match, e, 1.0) * r
            else:
                # General soft-target path (second transcendental).
                bce = jnp.maximum(x, 0.0) - x * t + log1pe
                one_m_pt = 1.0 - jnp.exp(-bce)
            focal = (ALPHA * one_m_pt) * one_m_pt * bce   # gamma == 2
            if masked:
                # Row-level mask (int32 row indices; numel < 2**38 asserted
                # in the wrapper), only traced/executed for the ragged block.
                rowi = jax.lax.broadcasted_iota(jnp.int32, focal.shape, 0)
                grow = blk * tile_rows + r0 + rowi
                focal = jnp.where(grow < valid_rows, focal, 0.0)
            # Collapse this strip onto the (8, 128) accumulator with
            # sublane-aligned pairwise vreg adds (no XLU, no big acc tile).
            acc_ref[...] += jnp.sum(
                focal.reshape(strip_rows // SUBLANE, SUBLANE, LANE), axis=0)

    if needs_mask:
        @pl.when(blk == blocks_total - 1)     # only the ragged last block masks
        def _():
            accumulate(True)

        if blocks_total > 1 or has_overhang:
            other = blk != blocks_total - 1
            if has_overhang:
                other = jnp.logical_and(other, blk < blocks_total)
            @pl.when(other)
            def _():
                accumulate(False)
    else:
        if has_overhang:
            @pl.when(blk < blocks_total)      # skip core-split overhang steps
            def _():
                accumulate(False)
        else:
            accumulate(False)

    @pl.when(i == pl.num_programs(1) - 1)
    def _():
        o_ref[...] = acc_ref[...]             # per-core partial (8, 128) sum


def _focal_sum_flat(x, t):
    """Plain-jnp focal-loss *sum* (used only for the <128-element tail)."""
    x = x.astype(jnp.float32)
    t = t.astype(jnp.float32)
    bce = jnp.maximum(x, 0.0) - x * t + jnp.log1p(jnp.exp(-jnp.abs(x)))
    pt = jnp.exp(-bce)
    return jnp.sum(ALPHA * (1.0 - pt) ** GAMMA * bce)


def focal_loss(logits, targets, *, tile_rows=4096, strip_rows=256,
               num_cores=2, hard_targets=True):
    """Mean focal loss over all elements (alpha=0.25, gamma=2).

    hard_targets=True assumes targets are exactly {0, 1} (as in the training
    pipeline); pass False for soft labels, which uses the general
    pt = exp(-bce) path.
    """
    assert logits.shape == targets.shape
    numel = int(logits.size)
    assert numel > 0
    assert numel < (1 << 38), "ragged-block mask uses int32 row indices"

    x = logits.reshape(-1)
    t = targets.reshape(-1)

    rows = numel // LANE
    tail = numel - rows * LANE            # < 128 leftover elements

    # Tail handled by a tiny jnp epilogue instead of padding the whole
    # flattened inputs (jnp.pad would add a full HBM read+write pass).
    tail_sum = jnp.zeros((), jnp.float32)
    if tail:
        tail_sum = _focal_sum_flat(x[rows * LANE:], t[rows * LANE:])
    if rows == 0:
        return tail_sum * (1.0 / numel)

    x2 = x[:rows * LANE].reshape(rows, LANE)
    t2 = t[:rows * LANE].reshape(rows, LANE)

    # Tile sizing (before any rounding to cores): strips are sublane-aligned,
    # tiles are whole numbers of strips, and both are clamped to the data.
    rows8 = -(-rows // SUBLANE) * SUBLANE
    strip_rows = max(SUBLANE, min((strip_rows // SUBLANE) * SUBLANE, rows8))
    tile_rows = min(tile_rows, -(-rows8 // strip_rows) * strip_rows)
    tile_rows = max(strip_rows, (tile_rows // strip_rows) * strip_rows)

    blocks_total = -(-rows // tile_rows)
    num_cores = max(1, min(num_cores, blocks_total))   # 1-TC parts: no waste
    blocks_per_core = -(-blocks_total // num_cores)
    has_overhang = (num_cores * blocks_per_core) != blocks_total

    kernel = functools.partial(
        _focal_loss_kernel,
        valid_rows=rows,
        tile_rows=tile_rows,
        strip_rows=strip_rows,
        blocks_total=blocks_total,
        blocks_per_core=blocks_per_core,
        has_overhang=has_overhang,
        hard_targets=hard_targets,
    )

    def in_map(c, i):
        # Clamp so the (<= num_cores-1) overhang steps of an uneven core
        # split just re-read the last block; the kernel skips their compute.
        return (jnp.minimum(c * blocks_per_core + i, blocks_total - 1), 0)

    partials = pl.pallas_call(
        kernel,
        out_shape=jax.ShapeDtypeStruct((num_cores * SUBLANE, LANE), jnp.float32),
        grid_spec=pltpu.PrefetchScalarGridSpec(
            num_scalar_prefetch=0,
            grid=(num_cores, blocks_per_core),
            in_specs=[
                pl.BlockSpec((tile_rows, LANE), in_map),
                pl.BlockSpec((tile_rows, LANE), in_map),
            ],
            out_specs=pl.BlockSpec((SUBLANE, LANE), lambda c, i: (c, 0)),
            scratch_shapes=[pltpu.VMEM((SUBLANE, LANE), jnp.float32)],
        ),
        # TODO(synk): on v7x, verify the leading "parallel" axis actually shards
        # across both TensorCores; if not, switch to pltpu.CORE_PARALLEL or an
        # explicit pl.core_map split.
        compiler_params=pltpu.CompilerParams(
            dimension_semantics=("parallel", "arbitrary"),
        ),
    )(x2, t2)

    # Combine the tiny per-core partial sums + tail, then take the mean.
    return (jnp.sum(partials) + tail_sum) * (1.0 / numel)


def focal_loss_ref(logits, targets):
    x = logits.astype(jnp.float32)
    t = targets.astype(jnp.float32)
    bce = jnp.maximum(x, 0.0) - x * t + jnp.log1p(jnp.exp(-jnp.abs(x)))
    pt = jnp.exp(-bce)
    return jnp.mean(ALPHA * (1.0 - pt) ** GAMMA * bce)


if __name__ == "__main__":
    # Small NCHW conv-style logits: (2, 4, 16, 16), binary {0,1} targets.
    key = jax.random.PRNGKey(0)
    k1, k2 = jax.random.split(key)
    shape = (2, 4, 16, 16)
    logits = jax.random.normal(k1, shape, dtype=jnp.float32) * 2.0
    targets = (jax.random.uniform(k2, shape) > 0.5).astype(jnp.float32)

    out = jax.block_until_ready(jax.jit(focal_loss)(logits, targets))
    ref = focal_loss_ref(logits, targets)
    assert out.shape == ()
    assert jnp.allclose(out, ref, atol=1e-6, rtol=1e-3), (out, ref)

    print("KERNEL_OK")
</pallas_src>

<mosaic_0001>
module attributes {stable_mosaic.version = 11 : i64} {
  func.func @_focal_loss_kernel(%arg0: i32, %arg1: i32, %arg2: memref<16x128xf32, #tpu.memory_space<vmem>>, %arg3: memref<16x128xf32, #tpu.memory_space<vmem>>, %arg4: memref<8x128xf32, #tpu.memory_space<vmem>>, %arg5: memref<8x128xf32, #tpu.memory_space<vmem>>) attributes {dimension_semantics = [#tpu.dimension_semantics<parallel>, #tpu.dimension_semantics<arbitrary>], iteration_bounds = array<i64: 1, 1>, scalar_prefetch = 0 : i64, scratch_operands = 1 : i64, tpu.core_type = #tpu.core_type<tc>, window_params = [{transform_indices = @transform_0, window_bounds = array<i64: 16, 128>}, {transform_indices = @transform_1, window_bounds = array<i64: 16, 128>}, {transform_indices = @transform_2, window_bounds = array<i64: 8, 128>}]} {
    %c0_i32 = arith.constant 0 : i32
    %0 = arith.cmpi eq, %arg1, %c0_i32 : i32
    %1 = arith.extui %0 : i1 to i32
    %c0_i32_0 = arith.constant 0 : i32
    %2 = arith.cmpi ne, %1, %c0_i32_0 : i32
    scf.if %2 {
      %cst_19 = arith.constant 0.000000e+00 : f32
      %41 = vector.broadcast %cst_19 : f32 to vector<8x128xf32>
      %c0_20 = arith.constant 0 : index
      %c0_21 = arith.constant 0 : index
      %42 = vector.load %arg5[%c0_20, %c0_21] : memref<8x128xf32, #tpu.memory_space<vmem>>, vector<8x128xf32>
      tpu.vector_store %arg5[%c0_20, %c0_21], %41 {strides = array<i32>} : memref<8x128xf32, #tpu.memory_space<vmem>>, vector<8x128xf32>,
    } else {
    }
    %c0 = arith.constant 0 : index
    %c0_1 = arith.constant 0 : index
    %3 = vector.load %arg2[%c0, %c0_1] : memref<16x128xf32, #tpu.memory_space<vmem>>, vector<16x128xf32>
    %c0_2 = arith.constant 0 : index
    %c0_3 = arith.constant 0 : index
    %4 = vector.load %arg3[%c0_2, %c0_3] : memref<16x128xf32, #tpu.memory_space<vmem>>, vector<16x128xf32>
    %5 = math.absf %3 : vector<16x128xf32>
    %cst = arith.constant 0.000000e+00 : f32
    %6 = vector.broadcast %cst : f32 to vector<16x128xf32>
    %7 = arith.subf %6, %5 : vector<16x128xf32>
    %8 = math.exp %7 : vector<16x128xf32>
    %cst_4 = arith.constant 1.000000e+00 : f32
    %9 = vector.broadcast %cst_4 : f32 to vector<16x128xf32>
    %10 = arith.addf %9, %8 : vector<16x128xf32>
    %11 = math.log %10 : vector<16x128xf32>
    %cst_5 = arith.constant 0.000000e+00 : f32
    %12 = vector.broadcast %cst_5 : f32 to vector<16x128xf32>
    %13 = arith.cmpf oge, %3, %12 : vector<16x128xf32>
    %cst_6 = arith.constant 5.000000e-01 : f32
    %14 = vector.broadcast %cst_6 : f32 to vector<16x128xf32>
    %15 = arith.cmpf ogt, %4, %14 : vector<16x128xf32>
    %16 = arith.xori %13, %15 : vector<16x128xi1>
    %cst_7 = arith.constant dense<true> : vector<16x128xi1>
    %17 = arith.xori %16, %cst_7 : vector<16x128xi1>
    %cst_8 = arith.constant 0.000000e+00 : f32
    %18 = vector.broadcast %cst_8 : f32 to vector<16x128xf32>
    %19 = arith.select %17, %18, %5 : vector<16x128xi1>, vector<16x128xf32>
    %20 = arith.addf %11, %19 : vector<16x128xf32>
    %21 = tpu.reciprocal %10 {approx = true} : vector<16x128xf32> -> vector<16x128xf32>
    %22 = arith.mulf %10, %21 : vector<16x128xf32>
    %cst_9 = arith.constant 2.000000e+00 : f32
    %23 = vector.broadcast %cst_9 : f32 to vector<16x128xf32>
    %24 = arith.subf %23, %22 : vector<16x128xf32>
    %25 = arith.mulf %21, %24 : vector<16x128xf32>
    %cst_10 = arith.constant 1.000000e+00 : f32
    %26 = vector.broadcast %cst_10 : f32 to vector<16x128xf32>
    %27 = arith.select %17, %8, %26 : vector<16x128xi1>, vector<16x128xf32>
    %28 = arith.mulf %27, %25 : vector<16x128xf32>
    %cst_11 = arith.constant 2.500000e-01 : f32
    %29 = vector.broadcast %cst_11 : f32 to vector<16x128xf32>
    %30 = arith.mulf %29, %28 : vector<16x128xf32>
    %31 = arith.mulf %30, %28 : vector<16x128xf32>
    %32 = arith.mulf %31, %20 : vector<16x128xf32>
    %c0_12 = arith.constant 0 : index
    %c0_13 = arith.constant 0 : index
    %33 = vector.load %arg5[%c0_12, %c0_13] : memref<8x128xf32, #tpu.memory_space<vmem>>, vector<8x128xf32>
    %34 = vector.shape_cast %32 : vector<16x128xf32> to vector<2x8x128xf32>
    %cst_14 = arith.constant dense<0.000000e+00> : vector<8x128xf32>
    %35 = vector.multi_reduction <add>, %34, %cst_14 [0] : vector<2x8x128xf32> to vector<8x128xf32>
    %36 = arith.addf %33, %35 : vector<8x128xf32>
    %c0_15 = arith.constant 0 : index
    %c0_16 = arith.constant 0 : index
    %37 = vector.load %arg5[%c0_15, %c0_16] : memref<8x128xf32, #tpu.memory_space<vmem>>, vector<8x128xf32>
    tpu.vector_store %arg5[%c0_15, %c0_16], %36 {strides = array<i32>} : memref<8x128xf32, #tpu.memory_space<vmem>>, vector<8x128xf32>,
    %c0_i32_17 = arith.constant 0 : i32
    %38 = arith.cmpi eq, %arg1, %c0_i32_17 : i32
    %39 = arith.extui %38 : i1 to i32
    %c0_i32_18 = arith.constant 0 : i32
    %40 = arith.cmpi ne, %39, %c0_i32_18 : i32
    scf.if %40 {
      %c0_19 = arith.constant 0 : index
      %c0_20 = arith.constant 0 : index
      %41 = vector.load %arg5[%c0_19, %c0_20] : memref<8x128xf32, #tpu.memory_space<vmem>>, vector<8x128xf32>
      %c0_21 = arith.constant 0 : index
      %c0_22 = arith.constant 0 : index
      %42 = vector.load %arg4[%c0_21, %c0_22] : memref<8x128xf32, #tpu.memory_space<vmem>>, vector<8x128xf32>
      tpu.vector_store %arg4[%c0_21, %c0_22], %41 {strides = array<i32>} : memref<8x128xf32, #tpu.memory_space<vmem>>, vector<8x128xf32>,
    } else {
    }
    return
  }
  func.func @transform_0(%arg0: i32, %arg1: i32) -> (i32, i32) {
    %c1_i32 = arith.constant 1 : i32
    %0 = arith.muli %arg0, %c1_i32 : i32
    %1 = arith.addi %0, %arg1 : i32
    %c0_i32 = arith.constant 0 : i32
    %2 = arith.minsi %1, %c0_i32 : i32
    %c0_i32_0 = arith.constant 0 : i32
    %c0_i32_1 = arith.constant 0 : i32
    return %2, %c0_i32_0 : i32, i32
  }
  func.func @transform_1(%arg0: i32, %arg1: i32) -> (i32, i32) {
    %c1_i32 = arith.constant 1 : i32
    %0 = arith.muli %arg0, %c1_i32 : i32
    %1 = arith.addi %0, %arg1 : i32
    %c0_i32 = arith.constant 0 : i32
    %2 = arith.minsi %1, %c0_i32 : i32
    %c0_i32_0 = arith.constant 0 : i32
    %c0_i32_1 = arith.constant 0 : i32
    return %2, %c0_i32_0 : i32, i32
  }
  func.func @transform_2(%arg0: i32, %arg1: i32) -> (i32, i32) {
    %c0_i32 = arith.constant 0 : i32
    %c0_i32_0 = arith.constant 0 : i32
    return %arg0, %c0_i32 : i32, i32
  }
}

</mosaic_0001>

<llo_original>
// kernel: focal_loss.1
$region0: #{focal_loss.1}
  #allocation0 [shape = 'u32[]', space=smem, size = 0x4, offset = 0x4, fixed_abs, tag = 'smem constant byte address 0x4 - core index']
  #allocation1 [shape = 'u32[144,128]{1,0:T(1,128)}', space=vmem, size = 0x12000, scoped, tag = 'internal scratch']
  #allocation2 [shape = 'f32[8,128]{1,0:T(8,128)}', space=vmem, size = 0x1000, scoped, tag = 'scratch operand']
  %s0 = inlined_call_operand.vmem [shape: f32[16,128], index: 0, kind: input, shape index: {}]
  %s1 = inlined_call_operand.vmem [shape: f32[16,128], index: 1, kind: input, shape index: {}]
  %s2 = inlined_call_operand.vmem [shape: f32[8,128], index: 2, kind: output, shape index: {}]
  %s3 = sld [smem:[#allocation0]]
  $region26: #{focal_loss.1} parent=0
    _
  %s5 = ssub.s32 1, %s3
  %s6 = scalar_select 0, %s5, %s3
  // Predicated region
  $region2: #{focal_loss.1} parent=0 // pred_check
    _
  $region3: #{focal_loss.1} parent=0 // pred_check_branch
    %8 = sbr.rel (0) target = $region5
  $region4: #{focal_loss.1} parent=0 // pred_region
    %s9 = sadd.s32 0, 0
    %p10 = scmp.lt.s32.totalorder %s9, 0
    %s11 = scalar_select %p10, %s9, 0
    %s12 = smul.u32 2, %s11
    %p13 = scmp.lt.s32.totalorder %s12, 1
    %s14 = scalar_select %p13, %s12, 1
    %s15 = smul.addr %s14, 8
    %s16 = scalar_lea.vmem %s0, %s15
    %s17 = sadd.s32 0, 0
    %p18 = scmp.lt.s32.totalorder %s17, 0
    %s19 = scalar_select %p18, %s17, 0
    %s20 = smul.u32 2, %s19
  $region5: #{focal_loss.1} parent=0 // pred_fallthru
    _
  // Predicated region
  $region6: #{focal_loss.1} parent=0 // pred_check
    _
  $region7: #{focal_loss.1} parent=0 // pred_check_branch
    %22 = sbr.rel (0) target = $region9
  $region8: #{focal_loss.1} parent=0 // pred_region
    %s23 = sadd.s32 0, 0
    %p24 = scmp.lt.s32.totalorder %s23, 0
    %s25 = scalar_select %p24, %s23, 0
    %s26 = smul.u32 2, %s25
    %p27 = scmp.lt.s32.totalorder %s26, 1
    %s28 = scalar_select %p27, %s26, 1
    %s29 = smul.addr %s28, 8
    %s30 = scalar_lea.vmem %s1, %s29
    %s31 = sadd.s32 0, 0
    %p32 = scmp.lt.s32.totalorder %s31, 0
    %s33 = scalar_select %p32, %s31, 0
    %s34 = smul.u32 2, %s33
  $region9: #{focal_loss.1} parent=0 // pred_fallthru
    _
  %s35 = sadd.s32 0, 0
  %p36 = scmp.lt.s32.totalorder %s35, 0
  %s37 = scalar_select %p36, %s35, 0
  %s38 = smul.u32 2, %s37
  %p39 = scmp.lt.s32.totalorder %s38, 1
  %s40 = scalar_select %p39, %s38, 1
  %s41 = smul.addr %s40, 8
  %s42 = scalar_lea.vmem %s0, %s41
  %s43 = sadd.s32 0, 0
  %p44 = scmp.lt.s32.totalorder %s43, 0
  %s45 = scalar_select %p44, %s43, 0
  %s46 = smul.u32 2, %s45
  %p47 = scmp.lt.s32.totalorder %s46, 1
  %s48 = scalar_select %p47, %s46, 1
  %s49 = smul.addr %s48, 8
  %s50 = scalar_lea.vmem %s1, %s49
  %s51 = sadd.s32 0, 0
  %p52 = scmp.lt.s32.totalorder %s51, 0
  %s53 = scalar_select %p52, %s51, 0
  %s54 = smul.u32 2, %s53
  %p55 = scmp.lt.s32.totalorder %s54, 1
  %s56 = scalar_select %p55, %s54, 1
  %s57 = smul.addr %s56, 8
  %s58 = scalar_lea.vmem %s0, %s57
  %s59 = sadd.s32 0, 0
  %p60 = scmp.lt.s32.totalorder %s59, 0
  %s61 = scalar_select %p60, %s59, 0
  %s62 = smul.u32 2, %s61
  %s63 = sadd.s32 0, 0
  %p64 = scmp.lt.s32.totalorder %s63, 0
  %s65 = scalar_select %p64, %s63, 0
  %s66 = smul.u32 2, %s65
  %p67 = scmp.lt.s32.totalorder %s66, 1
  %s68 = scalar_select %p67, %s66, 1
  %s69 = smul.addr %s68, 8
  %s70 = scalar_lea.vmem %s1, %s69
  %s71 = sadd.s32 0, 0
  %p72 = scmp.lt.s32.totalorder %s71, 0
  %s73 = scalar_select %p72, %s71, 0
  %s74 = smul.u32 2, %s73
  %p75 = scmp.eq.s32.totalorder 0, 0
  // Predicated region
  $region10: #{focal_loss.1} parent=0 // pred_check
    %p76 = pneg %p75
  $region11: #{focal_loss.1} parent=0 // pred_check_branch
    %78 = sbr.rel (%p76) target = $region13
  $region12: #{focal_loss.1} parent=0 // pred_region
    %79 = vst [vmem:[#allocation2] sm:$0xff] 0.0
  $region13: #{focal_loss.1} parent=0 // pred_fallthru
    _
  %v80 = vld [vmem:[%s58] sm:$0xff]
  %v81 = vld [vmem:[%s58 + $0x8] sm:$0xff]
  %v82 = vld [vmem:[%s70] sm:$0xff]
  %v83 = vld [vmem:[%s70 + $0x8] sm:$0xff]
  %v84 = vand.u32 2147483647, %v80
  %v85 = vand.u32 2147483647, %v81
  %v86 = vsub.f32 0.0, %v84
  %v87 = vsub.f32 0.0, %v85
  %v88 = vmul.f32 %v86, 1.442695
  %v89 = vpow.pop %v88
  %v90 = vmul.f32 %v87, 1.442695
  %v91 = vpow.pop %v90
  %v92 = vadd.f32 %v89, 1.0
  %v93 = vadd.f32 %v91, 1.0
  %v94 = vlog2.pop %v92
  %v95 = vmul.f32 %v94, 0.6931472
  %v96 = vlog2.pop %v93
  %v97 = vmul.f32 %v96, 0.6931472
  %vm98 = vcmp.ge.f32.partialorder %v80, 0.0
  %vm99 = vcmp.ge.f32.partialorder %v81, 0.0
  %vm100 = vcmp.gt.f32.partialorder %v82, 0.5
  %vm101 = vcmp.gt.f32.partialorder %v83, 0.5
  %vm102 = vmxor %vm98, %vm100
  %vm103 = vmxor %vm99, %vm101
  %vm104 = vmxor %vm102, 1
  %vm105 = vmxor %vm103, 1
  %v106 = vsel %vm104, 0.0, %v84
  %v107 = vsel %vm105, 0.0, %v85
  %v108 = vadd.f32 %v95, %v106
  %v109 = vadd.f32 %v97, %v107
  %v110 = vrcp.pop %v92
  %v111 = vrcp.pop %v93
  %v112 = vmul.f32 %v92, %v110
  %v113 = vmul.f32 %v93, %v111
  %v114 = vsub.f32 2.0, %v112
  %v115 = vsub.f32 2.0, %v113
  %v116 = vmul.f32 %v110, %v114
  %v117 = vmul.f32 %v111, %v115
  %v118 = vsel %vm104, %v89, 1.0
  %v119 = vsel %vm105, %v91, 1.0
  %v120 = vmul.f32 %v118, %v116
  %v121 = vmul.f32 %v119, %v117
  %v122 = vmul.f32 %v120, 0.25
  %v123 = vmul.f32 %v121, 0.25
  %v124 = vmul.f32 %v122, %v120
  %v125 = vmul.f32 %v123, %v121
  %v126 = vmul.f32 %v124, %v108
  %v127 = vmul.f32 %v125, %v109
  %v128 = vld [vmem:[#allocation2] sm:$0xff]
  %v129 = vadd.f32 %v126, %v127
  %v130 = vadd.f32 %v128, %v129
  %131 = vst [vmem:[#allocation2] sm:$0xff] %v130
  // Predicated region
  $region14: #{focal_loss.1} parent=0 // pred_check
    %p132 = pneg %p75
  $region15: #{focal_loss.1} parent=0 // pred_check_branch
    %134 = sbr.rel (%p132) target = $region17
  $region16: #{focal_loss.1} parent=0 // pred_region
    %v135 = vld [vmem:[#allocation2] sm:$0xff]
    %136 = vst [vmem:[%s2] sm:$0xff] %v135
  $region17: #{focal_loss.1} parent=0 // pred_fallthru
    _
  // Predicated region
  $region18: #{focal_loss.1} parent=0 // pred_check
    _
  $region19: #{focal_loss.1} parent=0 // pred_check_branch
    %138 = sbr.rel (0) target = $region21
  $region20: #{focal_loss.1} parent=0 // pred_region
    _
  $region21: #{focal_loss.1} parent=0 // pred_fallthru
    _
  // Predicated region
  $region22: #{focal_loss.1} parent=0 // pred_check
    _
  $region23: #{focal_loss.1} parent=0 // pred_check_branch
    %140 = sbr.rel (0) target = $region25
  $region24: #{focal_loss.1} parent=0 // pred_region
    _
  $region25: #{focal_loss.1} parent=0 // pred_fallthru
    _

</llo_original>
